<compile_context>
chip_gen: v6e
topology: v6e:2x2x1
jax: 0.10.0
libtpu: 0.0.40
codegen_flags: <defaults>
</compile_context>

<pallas_src>
import functools

import jax
import jax.numpy as jnp
from jax import lax
from jax.experimental import pallas as pl
from jax.experimental.pallas import tpu as pltpu


LANE = 128      # TPU lane width (last dim)
BF16_SUBLANE = 16  # bf16 sublane packing
BN_EPS = 1e-5   # PyTorch BatchNorm1d default


def _round_up(x, m):
    return (x + m - 1) // m * m


def _cdiv(a, b):
    return -(-a // b)


# ----------------------------- Pallas kernel --------------------------------


def _make_fused_mlp_kernel(n_blocks):
    """Build a kernel running the whole MLP on one batch tile.

    refs layout: (x, w0, s0, b0, ..., w_{n-1}, s_{n-1}, b_{n-1}, w_out, b_out, o)
      x      : (TB, Dinp)      bf16 input tile (batch-padded only)
      w_l    : (Dlp, Dl1p)     bf16 Linear weight (NOT BN-scaled)
      s_l    : (1, Dl1p)       f32 per-channel BN scale  gamma/sqrt(var+eps)
      b_l    : (1, Dl1p)       f32 folded bias (b - mean)*scale + beta
      w_out  : (1, Dlast_p)    bf16 row vector of the 1-wide output head
      b_out  : (1, 1)          f32
      o      : (1, 1, TB)      f32 compact logit row for this batch tile
    """

    def kernel(*refs):
        x_ref = refs[0]
        o_ref = refs[-1]

        h = x_ref[...]                                              # (TB, Dinp) bf16
        for l in range(n_blocks):
            w = refs[1 + 3 * l][...]                                # (Dlp, Dl1p) bf16
            s = refs[2 + 3 * l][...]                                # (1, Dl1p) f32
            bb = refs[3 + 3 * l][...]                               # (1, Dl1p) f32
            # Linear on the MXU, f32 accumulate.
            y = jnp.dot(h, w, preferred_element_type=jnp.float32)
            # eval-BatchNorm scale + bias + ReLU in f32 on the VPU;
            # Dropout is identity at inference.
            y = jnp.maximum(y * s + bb, 0.0)
            h = y.astype(w.dtype)                                   # back to bf16 for next matmul

        w_out = refs[1 + 3 * n_blocks][...]                         # (1, Dlast_p) bf16
        b_out = refs[2 + 3 * n_blocks][...]                         # (1, 1) f32
        # 1-wide head on the MXU: contract the last dims of w_out and h -> (1, TB).
        logit = lax.dot_general(
            w_out, h,
            dimension_numbers=(((1,), (1,)), ((), ())),
            preferred_element_type=jnp.float32)                     # (1, TB)
        o_ref[...] = (logit + b_out)[None]                          # (1, 1, TB) compact store

    return kernel


# ------------------------- parameter preparation ----------------------------


def init_params(key, n_features, layer_sizes, hidden_layers):
    """Deterministic synthetic parameters matching the PyTorch module's shapes."""
    params = []
    prev = n_features
    all_sizes = list(layer_sizes) + list(hidden_layers)
    for size in all_sizes:
        key, kw, kb, kg, kbeta, km, kv = jax.random.split(key, 7)
        scale = 1.0 / jnp.sqrt(jnp.float32(prev))
        layer = dict(
            w=jax.random.uniform(kw, (prev, size), jnp.float32, -scale, scale),
            b=jax.random.uniform(kb, (size,), jnp.float32, -scale, scale),
            gamma=1.0 + 0.1 * jax.random.normal(kg, (size,), jnp.float32),
            beta=0.1 * jax.random.normal(kbeta, (size,), jnp.float32),
            # running stats (eval-mode BatchNorm)
            mean=0.1 * jax.random.normal(km, (size,), jnp.float32),
            var=1.0 + 0.1 * jax.random.uniform(kv, (size,), jnp.float32),
        )
        params.append(layer)
        prev = size
    key, kw, kb = jax.random.split(key, 3)
    scale = 1.0 / jnp.sqrt(jnp.float32(prev))
    out_layer = dict(
        w=jax.random.uniform(kw, (prev, 1), jnp.float32, -scale, scale),
        b=jax.random.uniform(kb, (1,), jnp.float32, -scale, scale),
    )
    return params, out_layer


def prepare_params(params, out_layer, compute_dtype=jnp.bfloat16):
    """One-time prep.

    - Hidden widths are padded to 128 lanes (weights are tiny & resident).
    - The input feature dim is padded only to a multiple of 16 (bf16 sublanes),
      NOT to 128 — review item #2.
    - BN scale stays f32 (applied post-matmul), bias is folded with BN mean/beta.
    """
    ws, ss, bs = [], [], []
    d_in = params[0]["w"].shape[0]
    prev_p = _round_up(d_in, BF16_SUBLANE)
    for layer in params:
        din, dout = layer["w"].shape
        dout_p = _round_up(dout, LANE)
        inv_std = 1.0 / jnp.sqrt(layer["var"] + BN_EPS)
        bn_scale = layer["gamma"] * inv_std                              # (Dout,)
        bias = (layer["b"] - layer["mean"]) * bn_scale + layer["beta"]   # (Dout,)
        w_p = jnp.zeros((prev_p, dout_p), jnp.float32).at[:din, :dout].set(layer["w"])
        s_p = jnp.zeros((1, dout_p), jnp.float32).at[0, :dout].set(bn_scale)
        b_p = jnp.zeros((1, dout_p), jnp.float32).at[0, :dout].set(bias)
        ws.append(w_p.astype(compute_dtype))   # matmul operand -> bf16 (unscaled)
        ss.append(s_p)                         # BN scale stays f32
        bs.append(b_p)                         # bias stays f32
        prev_p = dout_p
    dlast = out_layer["w"].shape[0]
    w_out = jnp.zeros((1, prev_p), jnp.float32).at[0, :dlast].set(out_layer["w"][:, 0])
    b_out = out_layer["b"].reshape(1, 1).astype(jnp.float32)
    return dict(ws=ws, ss=ss, bs=bs,
                w_out=w_out.astype(compute_dtype), b_out=b_out)


# --------------------------------- forward ----------------------------------


@functools.partial(jax.jit, static_argnames=("batch_tile",))
def dnn_single_task_classifier_forward(x, prepped, batch_tile=1024):
    """Fused forward pass. Returns (B, 1) logits."""
    b = x.shape[0]
    x = x.reshape(b, -1)                               # x.view(x.size(0), -1)
    d_in = x.shape[1]

    ws, ss, bs = prepped["ws"], prepped["ss"], prepped["bs"]
    n_blocks = len(ws)
    compute_dtype = ws[0].dtype
    d_in_p = ws[0].shape[0]                            # multiple of 16, NOT 128

    # Batch tiling: >=2 grid steps (v7x dual TensorCore sharding of the
    # "parallel" axis), tb a multiple of 16 (bf16 sublane packing), minimal
    # batch padding.
    num_tiles = max(2, _cdiv(b, batch_tile))
    tb = _round_up(_cdiv(b, num_tiles), BF16_SUBLANE)
    b_p = tb * num_tiles

    # Only the batch is zero-padded; x is shipped to the kernel in bf16.
    x_p = jnp.zeros((b_p, d_in_p), compute_dtype).at[:b, :d_in].set(
        x.astype(compute_dtype))

    in_specs = [pl.BlockSpec((tb, d_in_p), lambda i: (i, 0))]
    flat_params = []
    for w, s, bias in zip(ws, ss, bs):
        in_specs.append(pl.BlockSpec(w.shape, lambda i: (0, 0)))       # weights resident
        in_specs.append(pl.BlockSpec(s.shape, lambda i: (0, 0)))
        in_specs.append(pl.BlockSpec(bias.shape, lambda i: (0, 0)))
        flat_params += [w, s, bias]
    in_specs.append(pl.BlockSpec(prepped["w_out"].shape, lambda i: (0, 0)))
    in_specs.append(pl.BlockSpec(prepped["b_out"].shape, lambda i: (0, 0)))

    # Compact (1, 1, tb) output block per grid step — lane-dense when tb >= 128,
    # and ~128x less writeback than the old (tb, 128) broadcast slab.
    out_specs = pl.BlockSpec((1, 1, tb), lambda i: (i, 0, 0))

    out = pl.pallas_call(
        _make_fused_mlp_kernel(n_blocks),
        out_shape=jax.ShapeDtypeStruct((num_tiles, 1, tb), jnp.float32),
        grid_spec=pltpu.PrefetchScalarGridSpec(
            num_scalar_prefetch=0,
            grid=(num_tiles,),
            in_specs=in_specs,
            out_specs=out_specs,
        ),
        compiler_params=pltpu.CompilerParams(
            dimension_semantics=("parallel",),          # shard batch tiles across TCs (v7x)
            vmem_limit_bytes=32 * 1024 * 1024,          # safe on v5e/v6e/v7x; usage is ~KBs
        ),
    )(x_p, *flat_params, prepped["w_out"], prepped["b_out"])

    # (num_tiles, 1, tb) -> (b, 1); rows are tile-major == original batch order.
    return out.reshape(-1)[:b].reshape(b, 1)


# ------------------------------ pure-JAX reference ---------------------------


def reference_forward(x, params, out_layer):
    h = x.reshape(x.shape[0], -1).astype(jnp.float32)
    for layer in params:
        y = h @ layer["w"] + layer["b"]
        inv_std = 1.0 / jnp.sqrt(layer["var"] + BN_EPS)
        y = (y - layer["mean"]) * inv_std * layer["gamma"] + layer["beta"]
        h = jnp.maximum(y, 0.0)
    return h @ out_layer["w"] + out_layer["b"]


# ----------------------------------- main ------------------------------------


if __name__ == "__main__":
    key = jax.random.PRNGKey(0)
    key, k_params, k_x = jax.random.split(key, 3)

    # Small, module-consistent configuration.
    batch = 8
    n_features = 32
    layer_sizes = [32, 16]
    dropouts = [0.1, 0.1]                 # inactive at inference
    hidden_layers = [16]
    hidden_layer_dropouts = [0.1]         # inactive at inference

    params, out_layer = init_params(k_params, n_features, layer_sizes, hidden_layers)
    x = jax.random.normal(k_x, (batch, n_features), jnp.float32)

    prepped = prepare_params(params, out_layer, compute_dtype=jnp.bfloat16)

    logits = dnn_single_task_classifier_forward(x, prepped)
    logits = jax.block_until_ready(logits)

    assert logits.shape == (batch, 1), logits.shape
    assert bool(jnp.all(jnp.isfinite(logits)))

    ref = reference_forward(x, params, out_layer)
    max_err = float(jnp.max(jnp.abs(logits - ref)))
    assert max_err < 1e-1, f"max abs err vs reference: {max_err}"

    print("KERNEL_OK")
</pallas_src>

<mosaic_0001>
module attributes {stable_mosaic.version = 11 : i64} {
  func.func @kernel(%arg0: i32, %arg1: memref<16x32xbf16, #tpu.memory_space<vmem>>, %arg2: memref<32x128xbf16, #tpu.memory_space<vmem>>, %arg3: memref<1x128xf32, #tpu.memory_space<vmem>>, %arg4: memref<1x128xf32, #tpu.memory_space<vmem>>, %arg5: memref<128x128xbf16, #tpu.memory_space<vmem>>, %arg6: memref<1x128xf32, #tpu.memory_space<vmem>>, %arg7: memref<1x128xf32, #tpu.memory_space<vmem>>, %arg8: memref<128x128xbf16, #tpu.memory_space<vmem>>, %arg9: memref<1x128xf32, #tpu.memory_space<vmem>>, %arg10: memref<1x128xf32, #tpu.memory_space<vmem>>, %arg11: memref<1x128xbf16, #tpu.memory_space<vmem>>, %arg12: memref<1x1xf32, #tpu.memory_space<vmem>>, %arg13: memref<1x1x16xf32, #tpu.memory_space<vmem>>) attributes {dimension_semantics = [#tpu.dimension_semantics<parallel>], iteration_bounds = array<i64: 2>, scalar_prefetch = 0 : i64, scratch_operands = 0 : i64, tpu.core_type = #tpu.core_type<tc>, window_params = [{transform_indices = @transform_0, window_bounds = array<i64: 16, 32>}, {pipeline_mode = #tpu.pipeline_mode<synchronous>, transform_indices = @transform_1, window_bounds = array<i64: 32, 128>}, {pipeline_mode = #tpu.pipeline_mode<synchronous>, transform_indices = @transform_2, window_bounds = array<i64: 1, 128>}, {pipeline_mode = #tpu.pipeline_mode<synchronous>, transform_indices = @transform_3, window_bounds = array<i64: 1, 128>}, {pipeline_mode = #tpu.pipeline_mode<synchronous>, transform_indices = @transform_4, window_bounds = array<i64: 128, 128>}, {pipeline_mode = #tpu.pipeline_mode<synchronous>, transform_indices = @transform_5, window_bounds = array<i64: 1, 128>}, {pipeline_mode = #tpu.pipeline_mode<synchronous>, transform_indices = @transform_6, window_bounds = array<i64: 1, 128>}, {pipeline_mode = #tpu.pipeline_mode<synchronous>, transform_indices = @transform_7, window_bounds = array<i64: 128, 128>}, {pipeline_mode = #tpu.pipeline_mode<synchronous>, transform_indices = @transform_8, window_bounds = array<i64: 1, 128>}, {pipeline_mode = #tpu.pipeline_mode<synchronous>, transform_indices = @transform_9, window_bounds = array<i64: 1, 128>}, {pipeline_mode = #tpu.pipeline_mode<synchronous>, transform_indices = @transform_10, window_bounds = array<i64: 1, 128>}, {pipeline_mode = #tpu.pipeline_mode<synchronous>, transform_indices = @transform_11, window_bounds = array<i64: 1, 1>}, {transform_indices = @transform_12, window_bounds = array<i64: 1, 1, 16>}]} {
    %c0 = arith.constant 0 : index
    %c0_0 = arith.constant 0 : index
    %0 = vector.load %arg1[%c0, %c0_0] : memref<16x32xbf16, #tpu.memory_space<vmem>>, vector<16x32xbf16>
    %c0_1 = arith.constant 0 : index
    %c0_2 = arith.constant 0 : index
    %1 = vector.load %arg2[%c0_1, %c0_2] : memref<32x128xbf16, #tpu.memory_space<vmem>>, vector<32x128xbf16>
    %c0_3 = arith.constant 0 : index
    %c0_4 = arith.constant 0 : index
    %2 = vector.load %arg3[%c0_3, %c0_4] : memref<1x128xf32, #tpu.memory_space<vmem>>, vector<1x128xf32>
    %c0_5 = arith.constant 0 : index
    %c0_6 = arith.constant 0 : index
    %3 = vector.load %arg4[%c0_5, %c0_6] : memref<1x128xf32, #tpu.memory_space<vmem>>, vector<1x128xf32>
    %cst = arith.constant dense<0.000000e+00> : vector<16x128xf32>
    %4 = tpu.matmul %0, %1, %cst {dimension_numbers = #tpu.dot_dimension_numbers<[1], [0], [0], [1], [0, 0, 1, 1], [], []>} : vector<16x32xbf16>, vector<32x128xbf16>, vector<16x128xf32> -> vector<16x128xf32>
    %5 = vector.broadcast %2 : vector<1x128xf32> to vector<16x128xf32>
    %6 = arith.mulf %4, %5 : vector<16x128xf32>
    %7 = vector.broadcast %3 : vector<1x128xf32> to vector<16x128xf32>
    %8 = arith.addf %6, %7 : vector<16x128xf32>
    %cst_7 = arith.constant 0.000000e+00 : f32
    %9 = vector.broadcast %cst_7 : f32 to vector<16x128xf32>
    %10 = arith.maximumf %8, %9 : vector<16x128xf32>
    %11 = arith.truncf %10 : vector<16x128xf32> to vector<16x128xbf16>
    %c0_8 = arith.constant 0 : index
    %c0_9 = arith.constant 0 : index
    %12 = vector.load %arg5[%c0_8, %c0_9] : memref<128x128xbf16, #tpu.memory_space<vmem>>, vector<128x128xbf16>
    %c0_10 = arith.constant 0 : index
    %c0_11 = arith.constant 0 : index
    %13 = vector.load %arg6[%c0_10, %c0_11] : memref<1x128xf32, #tpu.memory_space<vmem>>, vector<1x128xf32>
    %c0_12 = arith.constant 0 : index
    %c0_13 = arith.constant 0 : index
    %14 = vector.load %arg7[%c0_12, %c0_13] : memref<1x128xf32, #tpu.memory_space<vmem>>, vector<1x128xf32>
    %cst_14 = arith.constant dense<0.000000e+00> : vector<16x128xf32>
    %15 = tpu.matmul %11, %12, %cst_14 {dimension_numbers = #tpu.dot_dimension_numbers<[1], [0], [0], [1], [0, 0, 1, 1], [], []>} : vector<16x128xbf16>, vector<128x128xbf16>, vector<16x128xf32> -> vector<16x128xf32>
    %16 = vector.broadcast %13 : vector<1x128xf32> to vector<16x128xf32>
    %17 = arith.mulf %15, %16 : vector<16x128xf32>
    %18 = vector.broadcast %14 : vector<1x128xf32> to vector<16x128xf32>
    %19 = arith.addf %17, %18 : vector<16x128xf32>
    %cst_15 = arith.constant 0.000000e+00 : f32
    %20 = vector.broadcast %cst_15 : f32 to vector<16x128xf32>
    %21 = arith.maximumf %19, %20 : vector<16x128xf32>
    %22 = arith.truncf %21 : vector<16x128xf32> to vector<16x128xbf16>
    %c0_16 = arith.constant 0 : index
    %c0_17 = arith.constant 0 : index
    %23 = vector.load %arg8[%c0_16, %c0_17] : memref<128x128xbf16, #tpu.memory_space<vmem>>, vector<128x128xbf16>
    %c0_18 = arith.constant 0 : index
    %c0_19 = arith.constant 0 : index
    %24 = vector.load %arg9[%c0_18, %c0_19] : memref<1x128xf32, #tpu.memory_space<vmem>>, vector<1x128xf32>
    %c0_20 = arith.constant 0 : index
    %c0_21 = arith.constant 0 : index
    %25 = vector.load %arg10[%c0_20, %c0_21] : memref<1x128xf32, #tpu.memory_space<vmem>>, vector<1x128xf32>
    %cst_22 = arith.constant dense<0.000000e+00> : vector<16x128xf32>
    %26 = tpu.matmul %22, %23, %cst_22 {dimension_numbers = #tpu.dot_dimension_numbers<[1], [0], [0], [1], [0, 0, 1, 1], [], []>} : vector<16x128xbf16>, vector<128x128xbf16>, vector<16x128xf32> -> vector<16x128xf32>
    %27 = vector.broadcast %24 : vector<1x128xf32> to vector<16x128xf32>
    %28 = arith.mulf %26, %27 : vector<16x128xf32>
    %29 = vector.broadcast %25 : vector<1x128xf32> to vector<16x128xf32>
    %30 = arith.addf %28, %29 : vector<16x128xf32>
    %cst_23 = arith.constant 0.000000e+00 : f32
    %31 = vector.broadcast %cst_23 : f32 to vector<16x128xf32>
    %32 = arith.maximumf %30, %31 : vector<16x128xf32>
    %33 = arith.truncf %32 : vector<16x128xf32> to vector<16x128xbf16>
    %c0_24 = arith.constant 0 : index
    %c0_25 = arith.constant 0 : index
    %34 = vector.load %arg11[%c0_24, %c0_25] : memref<1x128xbf16, #tpu.memory_space<vmem>>, vector<1x128xbf16>
    %c0_26 = arith.constant 0 : index
    %c0_27 = arith.constant 0 : index
    %35 = vector.load %arg12[%c0_26, %c0_27] : memref<1x1xf32, #tpu.memory_space<vmem>>, vector<1x1xf32>
    %cst_28 = arith.constant dense<0.000000e+00> : vector<1x16xf32>
    %36 = tpu.matmul %34, %33, %cst_28 {dimension_numbers = #tpu.dot_dimension_numbers<[1], [1], [0], [0], [0, 0, 1, 0], [], []>} : vector<1x128xbf16>, vector<16x128xbf16>, vector<1x16xf32> -> vector<1x16xf32>
    %37 = vector.broadcast %35 : vector<1x1xf32> to vector<1x16xf32>
    %38 = arith.addf %36, %37 : vector<1x16xf32>
    %39 = vector.shape_cast %38 : vector<1x16xf32> to vector<1x1x16xf32>
    %c0_29 = arith.constant 0 : index
    %c0_30 = arith.constant 0 : index
    %c0_31 = arith.constant 0 : index
    %40 = vector.load %arg13[%c0_29, %c0_30, %c0_31] : memref<1x1x16xf32, #tpu.memory_space<vmem>>, vector<1x1x16xf32>
    tpu.vector_store %arg13[%c0_29, %c0_30, %c0_31], %39 {strides = array<i32>} : memref<1x1x16xf32, #tpu.memory_space<vmem>>, vector<1x1x16xf32>,
    return
  }
  func.func @transform_0(%arg0: i32) -> (i32, i32) {
    %c0_i32 = arith.constant 0 : i32
    %c0_i32_0 = arith.constant 0 : i32
    return %arg0, %c0_i32 : i32, i32
  }
  func.func @transform_1(%arg0: i32) -> (i32, i32) {
    %c0_i32 = arith.constant 0 : i32
    %c0_i32_0 = arith.constant 0 : i32
    %c0_i32_1 = arith.constant 0 : i32
    return %c0_i32, %c0_i32_0 : i32, i32
  }
  func.func @transform_2(%arg0: i32) -> (i32, i32) {
    %c0_i32 = arith.constant 0 : i32
    %c0_i32_0 = arith.constant 0 : i32
    %c0_i32_1 = arith.constant 0 : i32
    return %c0_i32, %c0_i32_0 : i32, i32
  }
  func.func @transform_3(%arg0: i32) -> (i32, i32) {
    %c0_i32 = arith.constant 0 : i32
    %c0_i32_0 = arith.constant 0 : i32
    %c0_i32_1 = arith.constant 0 : i32
    return %c0_i32, %c0_i32_0 : i32, i32
  }
  func.func @transform_4(%arg0: i32) -> (i32, i32) {
    %c0_i32 = arith.constant 0 : i32
    %c0_i32_0 = arith.constant 0 : i32
    %c0_i32_1 = arith.constant 0 : i32
    return %c0_i32, %c0_i32_0 : i32, i32
  }
  func.func @transform_5(%arg0: i32) -> (i32, i32) {
    %c0_i32 = arith.constant 0 : i32
    %c0_i32_0 = arith.constant 0 : i32
    %c0_i32_1 = arith.constant 0 : i32
    return %c0_i32, %c0_i32_0 : i32, i32
  }
  func.func @transform_6(%arg0: i32) -> (i32, i32) {
    %c0_i32 = arith.constant 0 : i32
    %c0_i32_0 = arith.constant 0 : i32
    %c0_i32_1 = arith.constant 0 : i32
    return %c0_i32, %c0_i32_0 : i32, i32
  }
  func.func @transform_7(%arg0: i32) -> (i32, i32) {
    %c0_i32 = arith.constant 0 : i32
    %c0_i32_0 = arith.constant 0 : i32
    %c0_i32_1 = arith.constant 0 : i32
    return %c0_i32, %c0_i32_0 : i32, i32
  }
  func.func @transform_8(%arg0: i32) -> (i32, i32) {
    %c0_i32 = arith.constant 0 : i32
    %c0_i32_0 = arith.constant 0 : i32
    %c0_i32_1 = arith.constant 0 : i32
    return %c0_i32, %c0_i32_0 : i32, i32
  }
  func.func @transform_9(%arg0: i32) -> (i32, i32) {
    %c0_i32 = arith.constant 0 : i32
    %c0_i32_0 = arith.constant 0 : i32
    %c0_i32_1 = arith.constant 0 : i32
    return %c0_i32, %c0_i32_0 : i32, i32
  }
  func.func @transform_10(%arg0: i32) -> (i32, i32) {
    %c0_i32 = arith.constant 0 : i32
    %c0_i32_0 = arith.constant 0 : i32
    %c0_i32_1 = arith.constant 0 : i32
    return %c0_i32, %c0_i32_0 : i32, i32
  }
  func.func @transform_11(%arg0: i32) -> (i32, i32) {
    %c0_i32 = arith.constant 0 : i32
    %c0_i32_0 = arith.constant 0 : i32
    %c0_i32_1 = arith.constant 0 : i32
    return %c0_i32, %c0_i32_0 : i32, i32
  }
  func.func @transform_12(%arg0: i32) -> (i32, i32, i32) {
    %c0_i32 = arith.constant 0 : i32
    %c0_i32_0 = arith.constant 0 : i32
    %c0_i32_1 = arith.constant 0 : i32
    return %arg0, %c0_i32, %c0_i32_0 : i32, i32, i32
  }
}

</mosaic_0001>

<llo_original>
// kernel: dnn_single_task_classifier_forward.1
$region0: #{dnn_single_task_classifier_forward.1}
  #allocation0 [shape = 'u32[]', space=smem, size = 0x4, offset = 0x4, fixed_abs, tag = 'smem constant byte address 0x4 - core index']
  #allocation1 [shape = 'u32[144,128]{1,0:T(1,128)}', space=vmem, size = 0x12000, scoped, tag = 'internal scratch']
  #allocation2 [shape = 'f32[1,1]{1,0:T(1,128)S(1)}', space=vmem, size = 0x200, scoped, tag = 'scoped memory for dnn_single_task_classifier_forward.1']
  %s0 = inlined_call_operand.vmem [shape: bf16[32,32], index: 0, kind: input, shape index: {}]
  %s1 = inlined_call_operand.vmem [shape: bf16[32,128], index: 1, kind: input, shape index: {}]
  %s2 = inlined_call_operand.vmem [shape: f32[1,128], index: 2, kind: input, shape index: {}]
  %s3 = inlined_call_operand.vmem [shape: f32[1,128], index: 3, kind: input, shape index: {}]
  %s4 = inlined_call_operand.hbm [shape: bf16[128,128], index: 4, kind: input, shape index: {}]
  %s5 = inlined_call_operand.vmem [shape: f32[1,128], index: 5, kind: input, shape index: {}]
  %s6 = inlined_call_operand.vmem [shape: f32[1,128], index: 6, kind: input, shape index: {}]
  %s7 = inlined_call_operand.hbm [shape: bf16[128,128], index: 7, kind: input, shape index: {}]
  %s8 = inlined_call_operand.vmem [shape: f32[1,128], index: 8, kind: input, shape index: {}]
  %s9 = inlined_call_operand.vmem [shape: f32[1,128], index: 9, kind: input, shape index: {}]
  %s10 = inlined_call_operand.vmem [shape: bf16[1,128], index: 10, kind: input, shape index: {}]
  %s11 = inlined_call_operand.<no memory space> [shape: f32[1,1], index: 11, kind: input, shape index: {}]
  %s12 = inlined_call_operand.vmem [shape: f32[2,1,16], index: 12, kind: output, shape index: {}]
  %s13 = sld [smem:[#allocation0]]
  $region89: #{dnn_single_task_classifier_forward.1} parent=0
    _
  %s15 = ssub.s32 1, %s13
  %s16 = scalar_select 0, %s15, %s13
  %v17 = vstv %s11
  %18 = vst [vmem:[#allocation2] sm:$0x1] %v17
  $region1: #{dnn_single_task_classifier_forward.1} parent=0
    #allocation3 [shape = 'u8[32768]{0}', space=vmem, size = 0x8000, scoped, tag = 'input window, operand 4, single buffered']
    #allocation4 [shape = 's32[2]{0}', space=sflag, size = 0x8, scoped, tag = 'scoped memory for dnn_single_task_classifier_forward.1']
    #allocation5 [shape = 'u8[32768]{0}', space=vmem, size = 0x8000, scoped, tag = 'input window, operand 7, single buffered']
    #allocation6 [shape = 's32[1]{0}', space=sflag, size = 0x4, scoped, tag = 'scoped memory for dnn_single_task_classifier_forward.1']
    %19 = vsyncpa [#allocation4], 0
    %20 = vsyncpa [#allocation6], 0
    loop: start=0, step=1, limit=4
    $region2: #{dnn_single_task_classifier_forward.1} parent=1 // loop_pre_header
      _
    $region3: #{dnn_single_task_classifier_forward.1} parent=1 // loop_header
      %s22 = sphi 0, %s26
      %p23 = scmp.ge.s32.totalorder %s22, 4
      %s32 = sphi 0, %s34
      %s35 = sphi 0, %s32
      %s36 = sphi 0, %s35
      %s52 = sphi 0, %s36
      %s56 = sphi 0, %s56
      %s58 = sphi 0, %s56
      %s59 = sphi 0, %s58
      %s73 = sphi 0, %s59
      %s77 = sphi 0, %s77
      %s79 = sphi 0, %s77
      %s80 = sphi 0, %s79
      %s94 = sphi 0, %s80
      %s98 = sphi 0, %s98
      %s100 = sphi 0, %s98
      %s101 = sphi 0, %s100
      %s115 = sphi 0, %s101
      %s119 = sphi 0, %s119
      %s121 = sphi 0, %s119
      %s122 = sphi 0, %s121
      %s136 = sphi 0, %s122
      %s140 = sphi 0, %s140
      %s142 = sphi 0, %s140
      %s143 = sphi 0, %s142
      %s157 = sphi 0, %s143
      %s161 = sphi 0, %s161
      %s163 = sphi 0, %s161
      %s164 = sphi 0, %s163
      %s178 = sphi 0, %s164
      %s182 = sphi 0, %s182
      %s184 = sphi 0, %s182
      %s185 = sphi 0, %s184
      %s199 = sphi 0, %s185
      %s203 = sphi 0, %s203
      %s205 = sphi 0, %s203
      %s206 = sphi 0, %s205
      %s220 = sphi 0, %s206
      %s224 = sphi 0, %s224
      %s226 = sphi 0, %s224
      %s227 = sphi 0, %s226
      %s241 = sphi 0, %s227
      %s245 = sphi 0, %s245
      %s247 = sphi 0, %s245
      %s248 = sphi 0, %s247
      %s262 = sphi 0, %s248
      %s266 = sphi 0, %s266
      %s268 = sphi 0, %s266
      %s269 = sphi 0, %s268
      %s283 = sphi 0, %s269
      %s289 = sphi 0, %s291
      %s292 = sphi 0, %s289
      %s293 = sphi 0, %s292
      %s309 = sphi 0, %s293
    $region4: #{dnn_single_task_classifier_forward.1} parent=1 // loop_header_branch
      %25 = sbr.rel (%p23) target = $region8
    $region5: #{dnn_single_task_classifier_forward.1} parent=1 // loop_body
      %s27 = ssub.s32 %s22, 1
      %s28 = ssub.s32 %s22, 2
      %s29 = sadd.s32 %s22, 1
      %s30 = ssub.s32 %s22, %s29
      %p31 = scmp.eq.s32.totalorder %s30, 0
      %s33 = sadd.s32 %s32, 1
      %s34 = scalar_select %p31, %s32, %s33
      %p37 = pneg %p31
      %p38 = scmp.eq.s32.totalorder %s22, 1
      %p39 = por %p37, %p38
      %p40 = scmp.ne.s32.totalorder %s32, %s35
      %p41 = scmp.eq.s32.totalorder %s22, 0
      %p42 = por %p40, %p41
      %p43 = scmp.ne.s32.totalorder %s32, %s35
      %p44 = scmp.eq.s32.totalorder %s27, 1
      %p45 = por %p43, %p44
      %p46 = scmp.ne.s32.totalorder %s35, %s36
      %p47 = scmp.eq.s32.totalorder %s27, 0
      %p48 = por %p46, %p47
      %p49 = scmp.ne.s32.totalorder %s35, %s36
      %p50 = scmp.eq.s32.totalorder %s28, 1
      %p51 = por %p49, %p50
      %p53 = scmp.ne.s32.totalorder %s36, %s52
      %p54 = scmp.eq.s32.totalorder %s28, 0
      %p55 = por %p53, %p54
      %s57 = sadd.s32 %s56, 1
      %p60 = scmp.eq.s32.totalorder %s22, 1
      %p61 = scmp.ne.s32.totalorder %s56, %s58
      %p62 = scmp.eq.s32.totalorder %s22, 0
      %p63 = por %p61, %p62
      %p64 = scmp.ne.s32.totalorder %s56, %s58
      %p65 = scmp.eq.s32.totalorder %s27, 1
      %p66 = por %p64, %p65
      %p67 = scmp.ne.s32.totalorder %s58, %s59
      %p68 = scmp.eq.s32.totalorder %s27, 0
      %p69 = por %p67, %p68
      %p70 = scmp.ne.s32.totalorder %s58, %s59
      %p71 = scmp.eq.s32.totalorder %s28, 1
      %p72 = por %p70, %p71
      %p74 = scmp.ne.s32.totalorder %s59, %s73
      %p75 = scmp.eq.s32.totalorder %s28, 0
      %p76 = por %p74, %p75
      %s78 = sadd.s32 %s77, 1
      %p81 = scmp.eq.s32.totalorder %s22, 1
      %p82 = scmp.ne.s32.totalorder %s77, %s79
      %p83 = scmp.eq.s32.totalorder %s22, 0
      %p84 = por %p82, %p83
      %p85 = scmp.ne.s32.totalorder %s77, %s79
      %p86 = scmp.eq.s32.totalorder %s27, 1
      %p87 = por %p85, %p86
      %p88 = scmp.ne.s32.totalorder %s79, %s80
      %p89 = scmp.eq.s32.totalorder %s27, 0
      %p90 = por %p88, %p89
      %p91 = scmp.ne.s32.totalorder %s79, %s80
      %p92 = scmp.eq.s32.totalorder %s28, 1
      %p93 = por %p91, %p92
      %p95 = scmp.ne.s32.totalorder %s80, %s94
      %p96 = scmp.eq.s32.totalorder %s28, 0
      %p97 = por %p95, %p96
      %s99 = sadd.s32 %s98, 1
      %p102 = scmp.eq.s32.totalorder %s22, 1
      %p103 = scmp.ne.s32.totalorder %s98, %s100
      %p104 = scmp.eq.s32.totalorder %s22, 0
      %p105 = por %p103, %p104
      %p106 = scmp.ne.s32.totalorder %s98, %s100
      %p107 = scmp.eq.s32.totalorder %s27, 1
      %p108 = por %p106, %p107
      %p109 = scmp.ne.s32.totalorder %s100, %s101
      %p110 = scmp.eq.s32.totalorder %s27, 0
      %p111 = por %p109, %p110
      %p112 = scmp.ne.s32.totalorder %s100, %s101
      %p113 = scmp.eq.s32.totalorder %s28, 1
      %p114 = por %p112, %p113
      %p116 = scmp.ne.s32.totalorder %s101, %s115
      %p117 = scmp.eq.s32.totalorder %s28, 0
      %p118 = por %p116, %p117
      %s120 = sadd.s32 %s119, 1
      %p123 = scmp.eq.s32.totalorder %s22, 1
      %p124 = scmp.ne.s32.totalorder %s119, %s121
      %p125 = scmp.eq.s32.totalorder %s22, 0
      %p126 = por %p124, %p125
      %p127 = scmp.ne.s32.totalorder %s119, %s121
      %p128 = scmp.eq.s32.totalorder %s27, 1
      %p129 = por %p127, %p128
      %p130 = scmp.ne.s32.totalorder %s121, %s122
      %p131 = scmp.eq.s32.totalorder %s27, 0
      %p132 = por %p130, %p131
      %p133 = scmp.ne.s32.totalorder %s121, %s122
      %p134 = scmp.eq.s32.totalorder %s28, 1
      %p135 = por %p133, %p134
      %p137 = scmp.ne.s32.totalorder %s122, %s136
      %p138 = scmp.eq.s32.totalorder %s28, 0
      %p139 = por %p137, %p138
      %s141 = sadd.s32 %s140, 1
      %p144 = scmp.eq.s32.totalorder %s22, 1
      %p145 = scmp.ne.s32.totalorder %s140, %s142
      %p146 = scmp.eq.s32.totalorder %s22, 0
      %p147 = por %p145, %p146
      %p148 = scmp.ne.s32.totalorder %s140, %s142
      %p149 = scmp.eq.s32.totalorder %s27, 1
      %p150 = por %p148, %p149
      %p151 = scmp.ne.s32.totalorder %s142, %s143
      %p152 = scmp.eq.s32.totalorder %s27, 0
      %p153 = por %p151, %p152
      %p154 = scmp.ne.s32.totalorder %s142, %s143
      %p155 = scmp.eq.s32.totalorder %s28, 1
      %p156 = por %p154, %p155
      %p158 = scmp.ne.s32.totalorder %s143, %s157
      %p159 = scmp.eq.s32.totalorder %s28, 0
      %p160 = por %p158, %p159
      %s162 = sadd.s32 %s161, 1
      %p165 = scmp.eq.s32.totalorder %s22, 1
      %p166 = scmp.ne.s32.totalorder %s161, %s163
      %p167 = scmp.eq.s32.totalorder %s22, 0
      %p168 = por %p166, %p167
      %p169 = scmp.ne.s32.totalorder %s161, %s163
      %p170 = scmp.eq.s32.totalorder %s27, 1
      %p171 = por %p169, %p170
      %p172 = scmp.ne.s32.totalorder %s163, %s164
      %p173 = scmp.eq.s32.totalorder %s27, 0
      %p174 = por %p172, %p173
      %p175 = scmp.ne.s32.totalorder %s163, %s164
      %p176 = scmp.eq.s32.totalorder %s28, 1
      %p177 = por %p175, %p176
      %p179 = scmp.ne.s32.totalorder %s164, %s178
      %p180 = scmp.eq.s32.totalorder %s28, 0
      %p181 = por %p179, %p180
      %s183 = sadd.s32 %s182, 1
      %p186 = scmp.eq.s32.totalorder %s22, 1
      %p187 = scmp.ne.s32.totalorder %s182, %s184
      %p188 = scmp.eq.s32.totalorder %s22, 0
      %p189 = por %p187, %p188
      %p190 = scmp.ne.s32.totalorder %s182, %s184
      %p191 = scmp.eq.s32.totalorder %s27, 1
      %p192 = por %p190, %p191
      %p193 = scmp.ne.s32.totalorder %s184, %s185
      %p194 = scmp.eq.s32.totalorder %s27, 0
      %p195 = por %p193, %p194
      %p196 = scmp.ne.s32.totalorder %s184, %s185
      %p197 = scmp.eq.s32.totalorder %s28, 1
      %p198 = por %p196, %p197
      %p200 = scmp.ne.s32.totalorder %s185, %s199
      %p201 = scmp.eq.s32.totalorder %s28, 0
      %p202 = por %p200, %p201
      %s204 = sadd.s32 %s203, 1
      %p207 = scmp.eq.s32.totalorder %s22, 1
      %p208 = scmp.ne.s32.totalorder %s203, %s205
      %p209 = scmp.eq.s32.totalorder %s22, 0
      %p210 = por %p208, %p209
      %p211 = scmp.ne.s32.totalorder %s203, %s205
      %p212 = scmp.eq.s32.totalorder %s27, 1
      %p213 = por %p211, %p212
      %p214 = scmp.ne.s32.totalorder %s205, %s206
      %p215 = scmp.eq.s32.totalorder %s27, 0
      %p216 = por %p214, %p215
      %p217 = scmp.ne.s32.totalorder %s205, %s206
      %p218 = scmp.eq.s32.totalorder %s28, 1
      %p219 = por %p217, %p218
      %p221 = scmp.ne.s32.totalorder %s206, %s220
      %p222 = scmp.eq.s32.totalorder %s28, 0
      %p223 = por %p221, %p222
      %s225 = sadd.s32 %s224, 1
      %p228 = scmp.eq.s32.totalorder %s22, 1
      %p229 = scmp.ne.s32.totalorder %s224, %s226
      %p230 = scmp.eq.s32.totalorder %s22, 0
      %p231 = por %p229, %p230
      %p232 = scmp.ne.s32.totalorder %s224, %s226
      %p233 = scmp.eq.s32.totalorder %s27, 1
      %p234 = por %p232, %p233
      %p235 = scmp.ne.s32.totalorder %s226, %s227
      %p236 = scmp.eq.s32.totalorder %s27, 0
      %p237 = por %p235, %p236
      %p238 = scmp.ne.s32.totalorder %s226, %s227
      %p239 = scmp.eq.s32.totalorder %s28, 1
      %p240 = por %p238, %p239
      %p242 = scmp.ne.s32.totalorder %s227, %s241
      %p243 = scmp.eq.s32.totalorder %s28, 0
      %p244 = por %p242, %p243
      %s246 = sadd.s32 %s245, 1
      %p249 = scmp.eq.s32.totalorder %s22, 1
      %p250 = scmp.ne.s32.totalorder %s245, %s247
      %p251 = scmp.eq.s32.totalorder %s22, 0
      %p252 = por %p250, %p251
      %p253 = scmp.ne.s32.totalorder %s245, %s247
      %p254 = scmp.eq.s32.totalorder %s27, 1
      %p255 = por %p253, %p254
      %p256 = scmp.ne.s32.totalorder %s247, %s248
      %p257 = scmp.eq.s32.totalorder %s27, 0
      %p258 = por %p256, %p257
      %p259 = scmp.ne.s32.totalorder %s247, %s248
      %p260 = scmp.eq.s32.totalorder %s28, 1
      %p261 = por %p259, %p260
      %p263 = scmp.ne.s32.totalorder %s248, %s262
      %p264 = scmp.eq.s32.totalorder %s28, 0
      %p265 = por %p263, %p264
      %s267 = sadd.s32 %s266, 1
      %p270 = scmp.eq.s32.totalorder %s22, 1
      %p271 = scmp.ne.s32.totalorder %s266, %s268
      %p272 = scmp.eq.s32.totalorder %s22, 0
      %p273 = por %p271, %p272
      %p274 = scmp.ne.s32.totalorder %s266, %s268
      %p275 = scmp.eq.s32.totalorder %s27, 1
      %p276 = por %p274, %p275
      %p277 = scmp.ne.s32.totalorder %s268, %s269
      %p278 = scmp.eq.s32.totalorder %s27, 0
      %p279 = por %p277, %p278
      %p280 = scmp.ne.s32.totalorder %s268, %s269
      %p281 = scmp.eq.s32.totalorder %s28, 1
      %p282 = por %p280, %p281
      %p284 = scmp.ne.s32.totalorder %s269, %s283
      %p285 = scmp.eq.s32.totalorder %s28, 0
      %p286 = por %p284, %p285
      %s287 = ssub.s32 %s22, %s29
      %p288 = scmp.eq.s32.totalorder %s287, 0
      %s290 = sadd.s32 %s289, 1
      %s291 = scalar_select %p288, %s289, %s290
      %p294 = pneg %p288
      %p295 = scmp.eq.s32.totalorder %s22, 1
      %p296 = por %p294, %p295
      %p297 = scmp.ne.s32.totalorder %s289, %s292
      %p298 = scmp.eq.s32.totalorder %s22, 0
      %p299 = por %p297, %p298
      %p300 = scmp.ne.s32.totalorder %s289, %s292
      %p301 = scmp.eq.s32.totalorder %s27, 1
      %p302 = por %p300, %p301
      %p303 = scmp.ne.s32.totalorder %s292, %s293
      %p304 = scmp.eq.s32.totalorder %s27, 0
      %p305 = por %p303, %p304
      %p306 = scmp.ne.s32.totalorder %s292, %s293
      %p307 = scmp.eq.s32.totalorder %s28, 1
      %p308 = por %p306, %p307
      %p310 = scmp.ne.s32.totalorder %s293, %s309
      %p311 = scmp.eq.s32.totalorder %s28, 0
      %p312 = por %p310, %p311
      %p313 = scmp.le.s32.totalorder 1, %s22
      %p314 = scmp.lt.s32.totalorder %s22, 3
      %p315 = pnand %p313, %p314
      %p316 = pneg %p315
      // Predicated region
      $region9: #{dnn_single_task_classifier_forward.1} parent=5 // pred_check
        _
      $region10: #{dnn_single_task_classifier_forward.1} parent=5 // pred_check_branch
        %318 = sbr.rel (%p315) target = $region12
      $region11: #{dnn_single_task_classifier_forward.1} parent=5 // pred_region
        %s319 = ssub.s32 %s22, 1
        // Predicated region
        $region13: #{dnn_single_task_classifier_forward.1} parent=11 // pred_check
          %p320 = pneg %p69
        $region14: #{dnn_single_task_classifier_forward.1} parent=11 // pred_check_branch
          %322 = sbr.rel (%p320) target = $region16
        $region15: #{dnn_single_task_classifier_forward.1} parent=11 // pred_region
          _
        $region16: #{dnn_single_task_classifier_forward.1} parent=11 // pred_fallthru
          _
        // Predicated region
        $region17: #{dnn_single_task_classifier_forward.1} parent=11 // pred_check
          %p323 = pneg %p90
        $region18: #{dnn_single_task_classifier_forward.1} parent=11 // pred_check_branch
          %325 = sbr.rel (%p323) target = $region20
        $region19: #{dnn_single_task_classifier_forward.1} parent=11 // pred_region
          _
        $region20: #{dnn_single_task_classifier_forward.1} parent=11 // pred_fallthru
          _
        // Predicated region
        $region21: #{dnn_single_task_classifier_forward.1} parent=11 // pred_check
          %p326 = pneg %p111
        $region22: #{dnn_single_task_classifier_forward.1} parent=11 // pred_check_branch
          %328 = sbr.rel (%p326) target = $region24
        $region23: #{dnn_single_task_classifier_forward.1} parent=11 // pred_region
          _
        $region24: #{dnn_single_task_classifier_forward.1} parent=11 // pred_fallthru
          _
        // Predicated region
        $region25: #{dnn_single_task_classifier_forward.1} parent=11 // pred_check
          %p329 = pneg %p132
        $region26: #{dnn_single_task_classifier_forward.1} parent=11 // pred_check_branch
          %331 = sbr.rel (%p329) target = $region28
        $region27: #{dnn_single_task_classifier_forward.1} parent=11 // pred_region
          %s333 = ssub.s32 1024, 1024
          %334 = vsyncadd [#allocation4], %s333
          %s335 = sshll.u32 [#allocation3], 4
          %s336 = int_to_ptr.vmem [resolvable:$true] %s335
          %341 = dma.hbm_to_vmem [thread:$0]  %s4, 1024, %s336, [#allocation4], 64, 64, 4
        $region28: #{dnn_single_task_classifier_forward.1} parent=11 // pred_fallthru
          _
        // Predicated region
        $region29: #{dnn_single_task_classifier_forward.1} parent=11 // pred_check
          %p342 = pneg %p153
        $region30: #{dnn_single_task_classifier_forward.1} parent=11 // pred_check_branch
          %344 = sbr.rel (%p342) target = $region32
        $region31: #{dnn_single_task_classifier_forward.1} parent=11 // pred_region
          _
        $region32: #{dnn_single_task_classifier_forward.1} parent=11 // pred_fallthru
          _
        // Predicated region
        $region33: #{dnn_single_task_classifier_forward.1} parent=11 // pred_check
          %p345 = pneg %p174
        $region34: #{dnn_single_task_classifier_forward.1} parent=11 // pred_check_branch
          %347 = sbr.rel (%p345) target = $region36
        $region35: #{dnn_single_task_classifier_forward.1} parent=11 // pred_region
          _
        $region36: #{dnn_single_task_classifier_forward.1} parent=11 // pred_fallthru
          _
        // Predicated region
        $region37: #{dnn_single_task_classifier_forward.1} parent=11 // pred_check
          %p348 = pneg %p195
        $region38: #{dnn_single_task_classifier_forward.1} parent=11 // pred_check_branch
          %350 = sbr.rel (%p348) target = $region40
        $region39: #{dnn_single_task_classifier_forward.1} parent=11 // pred_region
          %s352 = ssub.s32 1024, 1024
          %353 = vsyncadd [#allocation6], %s352
          %s354 = sshll.u32 [#allocation5], 4
          %s355 = int_to_ptr.vmem [resolvable:$true] %s354
          %360 = dma.hbm_to_vmem [thread:$0]  %s7, 1024, %s355, [#allocation6], 64, 64, 4
        $region40: #{dnn_single_task_classifier_forward.1} parent=11 // pred_fallthru
          _
        // Predicated region
        $region41: #{dnn_single_task_classifier_forward.1} parent=11 // pred_check
          %p361 = pneg %p216
        $region42: #{dnn_single_task_classifier_forward.1} parent=11 // pred_check_branch
          %363 = sbr.rel (%p361) target = $region44
        $region43: #{dnn_single_task_classifier_forward.1} parent=11 // pred_region
          _
        $region44: #{dnn_single_task_classifier_forward.1} parent=11 // pred_fallthru
          _
        // Predicated region
        $region45: #{dnn_single_task_classifier_forward.1} parent=11 // pred_check
          %p364 = pneg %p237
        $region46: #{dnn_single_task_classifier_forward.1} parent=11 // pred_check_branch
          %366 = sbr.rel (%p364) target = $region48
        $region47: #{dnn_single_task_classifier_forward.1} parent=11 // pred_region
          _
        $region48: #{dnn_single_task_classifier_forward.1} parent=11 // pred_fallthru
          _
        // Predicated region
        $region49: #{dnn_single_task_classifier_forward.1} parent=11 // pred_check
          %p367 = pneg %p258
        $region50: #{dnn_single_task_classifier_forward.1} parent=11 // pred_check_branch
          %369 = sbr.rel (%p367) target = $region52
        $region51: #{dnn_single_task_classifier_forward.1} parent=11 // pred_region
          _
        $region52: #{dnn_single_task_classifier_forward.1} parent=11 // pred_fallthru
          _
        // Predicated region
        $region53: #{dnn_single_task_classifier_forward.1} parent=11 // pred_check
          %p370 = pneg %p279
        $region54: #{dnn_single_task_classifier_forward.1} parent=11 // pred_check_branch
          %372 = sbr.rel (%p370) target = $region56
        $region55: #{dnn_single_task_classifier_forward.1} parent=11 // pred_region
          _
        $region56: #{dnn_single_task_classifier_forward.1} parent=11 // pred_fallthru
          _
      $region12: #{dnn_single_task_classifier_forward.1} parent=5 // pred_fallthru
        _
      %p373 = scmp.lt.s32.totalorder %s22, 2
      // Predicated region
      $region57: #{dnn_single_task_classifier_forward.1} parent=5 // pred_check
        %p374 = pneg %p373
      $region58: #{dnn_single_task_classifier_forward.1} parent=5 // pred_check_branch
        %376 = sbr.rel (%p374) target = $region60
      $region59: #{dnn_single_task_classifier_forward.1} parent=5 // pred_region
        // Predicated region
        $region61: #{dnn_single_task_classifier_forward.1} parent=59 // pred_check
          %p377 = pneg %p42
        $region62: #{dnn_single_task_classifier_forward.1} parent=59 // pred_check_branch
          %379 = sbr.rel (%p377) target = $region64
        $region63: #{dnn_single_task_classifier_forward.1} parent=59 // pred_region
          %s380 = smul.u32 2, %s22
          %p381 = scmp.lt.s32.totalorder %s380, 3
          %s382 = scalar_select %p381, %s380, 3
          %s383 = smul.addr %s382, 4
          %s384 = scalar_lea.vmem %s0, %s383
          %s385 = smul.u32 2, %s22
        $region64: #{dnn_single_task_classifier_forward.1} parent=59 // pred_fallthru
          _
      $region60: #{dnn_single_task_classifier_forward.1} parent=5 // pred_fallthru
        _
      %p386 = scmp.le.s32.totalorder 1, %s22
      %p387 = scmp.lt.s32.totalorder %s22, 3
      %p388 = pnand %p386, %p387
      %p389 = pneg %p388
      // Predicated region
      $region65: #{dnn_single_task_classifier_forward.1} parent=5 // pred_check
        _
      $region66: #{dnn_single_task_classifier_forward.1} parent=5 // pred_check_branch
        %391 = sbr.rel (%p388) target = $region68
      $region67: #{dnn_single_task_classifier_forward.1} parent=5 // pred_region
        %s392 = ssub.s32 %s22, 1
        // Predicated region
        $region69: #{dnn_single_task_classifier_forward.1} parent=67 // pred_check
          %p393 = pneg %p132
        $region70: #{dnn_single_task_classifier_forward.1} parent=67 // pred_check_branch
          %395 = sbr.rel (%p393) target = $region72
        $region71: #{dnn_single_task_classifier_forward.1} parent=67 // pred_region
          %396 = dma.done [#allocation4], 1024
        $region72: #{dnn_single_task_classifier_forward.1} parent=67 // pred_fallthru
          _
        // Predicated region
        $region73: #{dnn_single_task_classifier_forward.1} parent=67 // pred_check
          %p397 = pneg %p195
        $region74: #{dnn_single_task_classifier_forward.1} parent=67 // pred_check_branch
          %399 = sbr.rel (%p397) target = $region76
        $region75: #{dnn_single_task_classifier_forward.1} parent=67 // pred_region
          %400 = dma.done [#allocation6], 1024
        $region76: #{dnn_single_task_classifier_forward.1} parent=67 // pred_fallthru
          _
        %s401 = smul.u32 2, %s27
        %p402 = scmp.lt.s32.totalorder %s401, 3
        %s403 = scalar_select %p402, %s401, 3
        %s404 = smul.addr %s403, 4
        %s405 = scalar_lea.vmem %s0, %s404
        %p406 = pneg %p48
        %p407 = pneg %p45
        %p408 = pneg %p69
        %p409 = pneg %p66
        %p410 = pneg %p90
        %p411 = pneg %p87
        %p412 = pneg %p111
        %p413 = pneg %p108
        %p414 = pneg %p132
        %p415 = pneg %p129
        %p416 = pneg %p153
        %p417 = pneg %p150
        %p418 = pneg %p174
        %p419 = pneg %p171
        %p420 = pneg %p195
        %p421 = pneg %p192
        %p422 = pneg %p216
        %p423 = pneg %p213
        %p424 = pneg %p237
        %p425 = pneg %p234
        %p426 = pneg %p258
        %p427 = pneg %p255
        %p428 = pneg %p279
        %p429 = pneg %p276
        %p430 = pneg %p305
        %p431 = pneg %p302
        %p432 = scmp.lt.s32.totalorder %s27, 1
        %s433 = scalar_select %p432, %s27, 1
        %s434 = scalar_lea.vmem %s12, %s433
        %s435 = smul.u32 2, %s27
        %p436 = scmp.lt.s32.totalorder %s435, 3
        %s437 = scalar_select %p436, %s435, 3
        %s438 = smul.addr %s437, 4
        %s439 = scalar_lea.vmem %s0, %s438
        %s440 = smul.u32 2, %s27
        %p441 = scmp.lt.s32.totalorder %s27, 1
        %s442 = scalar_select %p441, %s27, 1
        %s443 = scalar_lea.vmem %s12, %s442
        %v445 = vld [vmem:[%s439] sm:$0xf]
        %v446 = vld [vmem:[%s439 + $0x4] sm:$0xf]
        %v447 = vld [vmem:[%s1] sm:$0xf]
        %v448 = vld [vmem:[%s1 + $0x4] sm:$0xf]
        %v449 = vld [vmem:[%s1 + $0x8] sm:$0xf]
        %v450 = vld [vmem:[%s1 + $0xc] sm:$0xf]
        %v451 = vld [vmem:[%s2] sm:$0x1]
        %v452 = vld [vmem:[%s3] sm:$0x1]
        %v455 = vunpack.c.l.b16 %v445
        %v456 = vunpack.c.l.b16 %v446
        %v457 = vpack.c.b16 %v456, %v455
        %v462 = vunpack.c.l.b16 %v447
        %v463 = vunpack.c.l.b16 %v448
        %v464 = vunpack.c.l.b16 %v449
        %v465 = vunpack.c.l.b16 %v450
        %v466 = vpack.c.b16 %v463, %v462
        %v467 = vpack.c.b16 %v465, %v464
        %vm470 = vcmask 261120
        %v472 = vsel %vm470, %v457, 0
        %474 = vmatprep.subr.bf16.mxu0 0
        %475 = vmatpush1.bf16.msra.mxu0 0
        %476 = vmatprep.subr.bf16.mxu0 0
        %477 = vmatpush1.bf16.msra.mxu0 0
        %478 = vmatprep.subr.bf16.mxu0 0
        %479 = vmatpush1.bf16.msra.mxu0 0
        %480 = vmatprep.subr.bf16.mxu0 0
        %481 = vmatpush1.bf16.msra.mxu0 0
        %482 = vmatprep.subr.bf16.mxu0 0
        %483 = vmatpush1.bf16.msra.mxu0 0
        %484 = vmatprep.subr.bf16.mxu0 0
        %485 = vmatpush1.bf16.msra.mxu0 0
        %486 = vmatprep.subr.bf16.mxu0 0
        %487 = vmatpush1.bf16.msra.mxu0 %v467
        %488 = vmatprep.subr.bf16.mxu0 0
        %489 = vmatpush1.bf16.msra.mxu0 %v466
        %490 = vmatprep.subr.bf16.mxu0 0
        %491 = vmatpush2.bf16.msra.mxu0 0
        %492 = vmatprep.subr.bf16.mxu0 0
        %493 = vmatpush2.bf16.msra.mxu0 0
        %494 = vmatprep.subr.bf16.mxu0 0
        %495 = vmatpush2.bf16.msra.mxu0 0
        %496 = vmatprep.subr.bf16.mxu0 0
        %497 = vmatpush2.bf16.msra.mxu0 0
        %498 = vmatprep.subr.bf16.mxu0 0
        %499 = vmatpush2.bf16.msra.mxu0 0
        %500 = vmatprep.subr.bf16.mxu0 0
        %501 = vmatpush2.bf16.msra.mxu0 0
        %502 = vmatprep.subr.bf16.mxu0 0
        %503 = vmatpush2.bf16.msra.mxu0 0
        %504 = vmatprep.subr.bf16.mxu0 0
        %505 = vmatpush2.bf16.msra.mxu0 0
        %506 = vmatprep.mubr.bf16.mxu0 0
        %507 = vmatmul.mubr.bf16.gmra.mxu0 %v472
        %v508 = vpop.f32.mrf.mxu0
        %v509 = vadd.f32 0.0, %v508
        %v510 = vpop.f32.mrf.mxu0
        %v511 = vpop.f32.mrf.mxu0
        %v512 = vadd.f32 0.0, %v511
        %v513 = vpop.f32.mrf.mxu0
        %514 = vdwg.mxu0
        %v516 = vlaneseq
        %v517 = vshrl.u32 %v516, 7
        %v518 = vsub.s32 0, %v517
        %v519 = vrot.slane %v451, %v518
        %v521 = vmul.f32 %v509, %v519
        %v522 = vmul.f32 %v512, %v519
        %v524 = vlaneseq
        %v525 = vshrl.u32 %v524, 7
        %v526 = vsub.s32 0, %v525
        %v527 = vrot.slane %v452, %v526
        %v529 = vadd.f32 %v521, %v527
        %v530 = vadd.f32 %v522, %v527
        %v531 = vmax.f32 %v529, 0.0
        %v532 = vmax.f32 %v530, 0.0
        %v533 = vpack.c.bf16 %v532, %v531
        %v534 = vld [vmem:[#allocation3] sm:$0xf]
        %v535 = vld [vmem:[#allocation3 + $0x4] sm:$0xf]
        %v536 = vld [vmem:[#allocation3 + $0x8] sm:$0xf]
        %v537 = vld [vmem:[#allocation3 + $0xc] sm:$0xf]
        %v538 = vld [vmem:[#allocation3 + $0x10] sm:$0xf]
        %v539 = vld [vmem:[#allocation3 + $0x14] sm:$0xf]
        %v540 = vld [vmem:[#allocation3 + $0x18] sm:$0xf]
        %v541 = vld [vmem:[#allocation3 + $0x1c] sm:$0xf]
        %v542 = vld [vmem:[#allocation3 + $0x20] sm:$0xf]
        %v543 = vld [vmem:[#allocation3 + $0x24] sm:$0xf]
        %v544 = vld [vmem:[#allocation3 + $0x28] sm:$0xf]
        %v545 = vld [vmem:[#allocation3 + $0x2c] sm:$0xf]
        %v546 = vld [vmem:[#allocation3 + $0x30] sm:$0xf]
        %v547 = vld [vmem:[#allocation3 + $0x34] sm:$0xf]
        %v548 = vld [vmem:[#allocation3 + $0x38] sm:$0xf]
        %v549 = vld [vmem:[#allocation3 + $0x3c] sm:$0xf]
        %v550 = vld [vmem:[%s5] sm:$0x1]
        %v551 = vld [vmem:[%s6] sm:$0x1]
        %v568 = vunpack.c.l.b16 %v534
        %v569 = vunpack.c.l.b16 %v535
        %v570 = vunpack.c.l.b16 %v536
        %v571 = vunpack.c.l.b16 %v537
        %v572 = vunpack.c.l.b16 %v538
        %v573 = vunpack.c.l.b16 %v539
        %v574 = vunpack.c.l.b16 %v540
        %v575 = vunpack.c.l.b16 %v541
        %v576 = vunpack.c.l.b16 %v542
        %v577 = vunpack.c.l.b16 %v543
        %v578 = vunpack.c.l.b16 %v544
        %v579 = vunpack.c.l.b16 %v545
        %v580 = vunpack.c.l.b16 %v546
        %v581 = vunpack.c.l.b16 %v547
        %v582 = vunpack.c.l.b16 %v548
        %v583 = vunpack.c.l.b16 %v549
        %v584 = vpack.c.b16 %v569, %v568
        %v585 = vpack.c.b16 %v571, %v570
        %v586 = vpack.c.b16 %v573, %v572
        %v587 = vpack.c.b16 %v575, %v574
        %v588 = vpack.c.b16 %v577, %v576
        %v589 = vpack.c.b16 %v579, %v578
        %v590 = vpack.c.b16 %v581, %v580
        %v591 = vpack.c.b16 %v583, %v582
        %600 = vmatprep.subr.bf16.mxu0 0
        %601 = vmatpush1.bf16.msra.mxu0 %v591
        %602 = vmatprep.subr.bf16.mxu0 0
        %603 = vmatpush1.bf16.msra.mxu0 %v590
        %604 = vmatprep.subr.bf16.mxu0 0
        %605 = vmatpush1.bf16.msra.mxu0 %v589
        %606 = vmatprep.subr.bf16.mxu0 0
        %607 = vmatpush1.bf16.msra.mxu0 %v588
        %608 = vmatprep.subr.bf16.mxu0 0
        %609 = vmatpush1.bf16.msra.mxu0 %v587
        %610 = vmatprep.subr.bf16.mxu0 0
        %611 = vmatpush1.bf16.msra.mxu0 %v586
        %612 = vmatprep.subr.bf16.mxu0 0
        %613 = vmatpush1.bf16.msra.mxu0 %v585
        %614 = vmatprep.subr.bf16.mxu0 0
        %615 = vmatpush1.bf16.msra.mxu0 %v584
        %616 = vmatprep.subr.bf16.mxu0 0
        %617 = vmatpush2.bf16.msra.mxu0 0
        %618 = vmatprep.subr.bf16.mxu0 0
        %619 = vmatpush2.bf16.msra.mxu0 0
        %620 = vmatprep.subr.bf16.mxu0 0
        %621 = vmatpush2.bf16.msra.mxu0 0
        %622 = vmatprep.subr.bf16.mxu0 0
        %623 = vmatpush2.bf16.msra.mxu0 0
        %624 = vmatprep.subr.bf16.mxu0 0
        %625 = vmatpush2.bf16.msra.mxu0 0
        %626 = vmatprep.subr.bf16.mxu0 0
        %627 = vmatpush2.bf16.msra.mxu0 0
        %628 = vmatprep.subr.bf16.mxu0 0
        %629 = vmatpush2.bf16.msra.mxu0 0
        %630 = vmatprep.subr.bf16.mxu0 0
        %631 = vmatpush2.bf16.msra.mxu0 0
        %632 = vmatprep.mubr.bf16.mxu0 0
        %633 = vmatmul.mubr.bf16.gmra.mxu0 %v533
        %v634 = vpop.f32.mrf.mxu0
        %v635 = vadd.f32 0.0, %v634
        %v636 = vpop.f32.mrf.mxu0
        %v637 = vpop.f32.mrf.mxu0
        %v638 = vadd.f32 0.0, %v637
        %v639 = vpop.f32.mrf.mxu0
        %640 = vdwg.mxu0
        %v642 = vlaneseq
        %v643 = vshrl.u32 %v642, 7
        %v644 = vsub.s32 0, %v643
        %v645 = vrot.slane %v550, %v644
        %v647 = vmul.f32 %v635, %v645
        %v648 = vmul.f32 %v638, %v645
        %v650 = vlaneseq
        %v651 = vshrl.u32 %v650, 7
        %v652 = vsub.s32 0, %v651
        %v653 = vrot.slane %v551, %v652
        %v655 = vadd.f32 %v647, %v653
        %v656 = vadd.f32 %v648, %v653
        %v657 = vmax.f32 %v655, 0.0
        %v658 = vmax.f32 %v656, 0.0
        %v659 = vpack.c.bf16 %v658, %v657
        %v660 = vld [vmem:[#allocation5] sm:$0xf]
        %v661 = vld [vmem:[#allocation5 + $0x4] sm:$0xf]
        %v662 = vld [vmem:[#allocation5 + $0x8] sm:$0xf]
        %v663 = vld [vmem:[#allocation5 + $0xc] sm:$0xf]
        %v664 = vld [vmem:[#allocation5 + $0x10] sm:$0xf]
        %v665 = vld [vmem:[#allocation5 + $0x14] sm:$0xf]
        %v666 = vld [vmem:[#allocation5 + $0x18] sm:$0xf]
        %v667 = vld [vmem:[#allocation5 + $0x1c] sm:$0xf]
        %v668 = vld [vmem:[#allocation5 + $0x20] sm:$0xf]
        %v669 = vld [vmem:[#allocation5 + $0x24] sm:$0xf]
        %v670 = vld [vmem:[#allocation5 + $0x28] sm:$0xf]
        %v671 = vld [vmem:[#allocation5 + $0x2c] sm:$0xf]
        %v672 = vld [vmem:[#allocation5 + $0x30] sm:$0xf]
        %v673 = vld [vmem:[#allocation5 + $0x34] sm:$0xf]
        %v674 = vld [vmem:[#allocation5 + $0x38] sm:$0xf]
        %v675 = vld [vmem:[#allocation5 + $0x3c] sm:$0xf]
        %v676 = vld [vmem:[%s8] sm:$0x1]
        %v677 = vld [vmem:[%s9] sm:$0x1]
        %v694 = vunpack.c.l.b16 %v660
        %v695 = vunpack.c.l.b16 %v661
        %v696 = vunpack.c.l.b16 %v662
        %v697 = vunpack.c.l.b16 %v663
        %v698 = vunpack.c.l.b16 %v664
        %v699 = vunpack.c.l.b16 %v665
        %v700 = vunpack.c.l.b16 %v666
        %v701 = vunpack.c.l.b16 %v667
        %v702 = vunpack.c.l.b16 %v668
        %v703 = vunpack.c.l.b16 %v669
        %v704 = vunpack.c.l.b16 %v670
        %v705 = vunpack.c.l.b16 %v671
        %v706 = vunpack.c.l.b16 %v672
        %v707 = vunpack.c.l.b16 %v673
        %v708 = vunpack.c.l.b16 %v674
        %v709 = vunpack.c.l.b16 %v675
        %v710 = vpack.c.b16 %v695, %v694
        %v711 = vpack.c.b16 %v697, %v696
        %v712 = vpack.c.b16 %v699, %v698
        %v713 = vpack.c.b16 %v701, %v700
        %v714 = vpack.c.b16 %v703, %v702
        %v715 = vpack.c.b16 %v705, %v704
        %v716 = vpack.c.b16 %v707, %v706
        %v717 = vpack.c.b16 %v709, %v708
        %726 = vmatprep.subr.bf16.mxu0 0
        %727 = vmatpush1.bf16.msra.mxu0 %v717
        %728 = vmatprep.subr.bf16.mxu0 0
        %729 = vmatpush1.bf16.msra.mxu0 %v716
        %730 = vmatprep.subr.bf16.mxu0 0
        %731 = vmatpush1.bf16.msra.mxu0 %v715
        %732 = vmatprep.subr.bf16.mxu0 0
        %733 = vmatpush1.bf16.msra.mxu0 %v714
        %734 = vmatprep.subr.bf16.mxu0 0
        %735 = vmatpush1.bf16.msra.mxu0 %v713
        %736 = vmatprep.subr.bf16.mxu0 0
        %737 = vmatpush1.bf16.msra.mxu0 %v712
        %738 = vmatprep.subr.bf16.mxu0 0
        %739 = vmatpush1.bf16.msra.mxu0 %v711
        %740 = vmatprep.subr.bf16.mxu0 0
        %741 = vmatpush1.bf16.msra.mxu0 %v710
        %742 = vmatprep.subr.bf16.mxu0 0
        %743 = vmatpush2.bf16.msra.mxu0 0
        %744 = vmatprep.subr.bf16.mxu0 0
        %745 = vmatpush2.bf16.msra.mxu0 0
        %746 = vmatprep.subr.bf16.mxu0 0
        %747 = vmatpush2.bf16.msra.mxu0 0
        %748 = vmatprep.subr.bf16.mxu0 0
        %749 = vmatpush2.bf16.msra.mxu0 0
        %750 = vmatprep.subr.bf16.mxu0 0
        %751 = vmatpush2.bf16.msra.mxu0 0
        %752 = vmatprep.subr.bf16.mxu0 0
        %753 = vmatpush2.bf16.msra.mxu0 0
        %754 = vmatprep.subr.bf16.mxu0 0
        %755 = vmatpush2.bf16.msra.mxu0 0
        %756 = vmatprep.subr.bf16.mxu0 0
        %757 = vmatpush2.bf16.msra.mxu0 0
        %758 = vmatprep.mubr.bf16.mxu0 0
        %759 = vmatmul.mubr.bf16.gmra.mxu0 %v659
        %v760 = vpop.f32.mrf.mxu0
        %v761 = vadd.f32 0.0, %v760
        %v762 = vpop.f32.mrf.mxu0
        %v763 = vpop.f32.mrf.mxu0
        %v764 = vadd.f32 0.0, %v763
        %v765 = vpop.f32.mrf.mxu0
        %766 = vdwg.mxu0
        %v768 = vlaneseq
        %v769 = vshrl.u32 %v768, 7
        %v770 = vsub.s32 0, %v769
        %v771 = vrot.slane %v676, %v770
        %v773 = vmul.f32 %v761, %v771
        %v774 = vmul.f32 %v764, %v771
        %v776 = vlaneseq
        %v777 = vshrl.u32 %v776, 7
        %v778 = vsub.s32 0, %v777
        %v779 = vrot.slane %v677, %v778
        %v781 = vadd.f32 %v773, %v779
        %v782 = vadd.f32 %v774, %v779
        %v783 = vmax.f32 %v781, 0.0
        %v784 = vmax.f32 %v782, 0.0
        %v785 = vpack.c.bf16 %v784, %v783
        %v786 = vld [vmem:[%s10] sm:$0x1]
        %v787 = vld [vmem:[#allocation2] sm:$0x1]
        %789 = vset.pattern.permute.xlu0 0
        %790 = vperm.xlu0 %789, %v787
        %v791 = vpop.permute.xlu0 %790
        %v793 = vlaneseq
        %v794 = vshrl.u32 %v793, 7
        %v795 = vsub.s32 0, %v794
        %v796 = vrot.slane %v791, %v795
        %797 = vmatprep.subr.bf16.mxu0 0
        %798 = vmatpush1.bf16.xpose.msra.mxu0 0
        %799 = vmatprep.subr.bf16.mxu0 0
        %800 = vmatpush1.bf16.xpose.msra.mxu0 0
        %801 = vmatprep.subr.bf16.mxu0 0
        %802 = vmatpush1.bf16.xpose.msra.mxu0 0
        %803 = vmatprep.subr.bf16.mxu0 0
        %804 = vmatpush1.bf16.xpose.msra.mxu0 0
        %805 = vmatprep.subr.bf16.mxu0 0
        %806 = vmatpush1.bf16.xpose.msra.mxu0 0
        %807 = vmatprep.subr.bf16.mxu0 0
        %808 = vmatpush1.bf16.xpose.msra.mxu0 0
        %809 = vmatprep.subr.bf16.mxu0 0
        %810 = vmatpush1.bf16.xpose.msra.mxu0 0
        %811 = vmatprep.subr.bf16.mxu0 0
        %812 = vmatpush1.bf16.xpose.msra.mxu0 %v785
        %813 = vmatprep.subr.bf16.mxu0 0
        %814 = vmatpush2.bf16.xpose.msra.mxu0 0
        %815 = vmatprep.subr.bf16.mxu0 0
        %816 = vmatpush2.bf16.xpose.msra.mxu0 0
        %817 = vmatprep.subr.bf16.mxu0 0
        %818 = vmatpush2.bf16.xpose.msra.mxu0 0
        %819 = vmatprep.subr.bf16.mxu0 0
        %820 = vmatpush2.bf16.xpose.msra.mxu0 0
        %821 = vmatprep.subr.bf16.mxu0 0
        %822 = vmatpush2.bf16.xpose.msra.mxu0 0
        %823 = vmatprep.subr.bf16.mxu0 0
        %824 = vmatpush2.bf16.xpose.msra.mxu0 0
        %825 = vmatprep.subr.bf16.mxu0 0
        %826 = vmatpush2.bf16.xpose.msra.mxu0 0
        %827 = vmatprep.subr.bf16.mxu0 0
        %828 = vmatpush2.bf16.xpose.msra.mxu0 0
        %829 = vmatprep.mubr.bf16.mxu0 0
        %830 = vmatmul.mubr.bf16.gmra.mxu0 %v786
        %v831 = vpop.f32.mrf.mxu0
        %v832 = vadd.f32 %v796, %v831
        %v833 = vpop.f32.mrf.mxu0
        %v834 = vpop.f32.mrf.mxu0
        %v835 = vpop.f32.mrf.mxu0
        %836 = vdwg.mxu0
        %vm837 = vcmask 122880
        %838 = vst.msk [vmem:[%s443] sm:$0x1] %vm837, %v832
        %p839 = scmp.lt.s32.totalorder %s27, 1
        %s840 = scalar_select %p839, %s27, 1
        %s841 = scalar_lea.vmem %s12, %s840
        // Predicated region
        $region77: #{dnn_single_task_classifier_forward.1} parent=67 // pred_check
          %p842 = pneg %p302
        $region78: #{dnn_single_task_classifier_forward.1} parent=67 // pred_check_branch
          %844 = sbr.rel (%p842) target = $region80
        $region79: #{dnn_single_task_classifier_forward.1} parent=67 // pred_region
          _
        $region80: #{dnn_single_task_classifier_forward.1} parent=67 // pred_fallthru
          _
      $region68: #{dnn_single_task_classifier_forward.1} parent=5 // pred_fallthru
        _
      %p845 = scmp.le.s32.totalorder 2, %s22
      // Predicated region
      $region81: #{dnn_single_task_classifier_forward.1} parent=5 // pred_check
        %p846 = pneg %p845
      $region82: #{dnn_single_task_classifier_forward.1} parent=5 // pred_check_branch
        %848 = sbr.rel (%p846) target = $region84
      $region83: #{dnn_single_task_classifier_forward.1} parent=5 // pred_region
        %s849 = ssub.s32 %s22, 2
        // Predicated region
        $region85: #{dnn_single_task_classifier_forward.1} parent=83 // pred_check
          %p850 = pneg %p308
        $region86: #{dnn_single_task_classifier_forward.1} parent=83 // pred_check_branch
          %852 = sbr.rel (%p850) target = $region88
        $region87: #{dnn_single_task_classifier_forward.1} parent=83 // pred_region
          %p853 = scmp.lt.s32.totalorder %s28, 1
          %s854 = scalar_select %p853, %s28, 1
          %s855 = scalar_lea.vmem %s12, %s854
        $region88: #{dnn_single_task_classifier_forward.1} parent=83 // pred_fallthru
          _
      $region84: #{dnn_single_task_classifier_forward.1} parent=5 // pred_fallthru
        _
    $region6: #{dnn_single_task_classifier_forward.1} parent=1 // loop_footer
      %s26 = sadd.s32 1, %s22
    $region7: #{dnn_single_task_classifier_forward.1} parent=1 // loop_footer_branch
      %21 = sbr.rel target = $region3
    $region8: #{dnn_single_task_classifier_forward.1} parent=1 // loop_exit
      _
    %856 = vsyncpa [#allocation4], 1
    %s857 = scalar_lea.sflag [#allocation4], 1
    %858 = vsyncpa %s857, 1
    %859 = vsyncpa [#allocation6], 1

</llo_original>
